<compile_context>
chip_gen: v7x
topology: tpu7x:2x2x1
jax: 0.10.0
libtpu: 0.0.40
codegen_flags: <defaults>
</compile_context>

<pallas_src>
from math import sqrt

import jax
import jax.numpy as jnp
from jax.experimental import pallas as pl
from jax.experimental.pallas import tpu as pltpu


def _round_up(x, m):
    return (x + m - 1) // m * m


def _vmem_budget_bytes():
    """~75% of physical VMEM (generation-aware), capped at 112 MiB."""
    try:
        cap = int(pltpu.get_tpu_info().vmem_capacity_bytes)
    except Exception:
        cap = 64 << 20  # conservative default (v7x has 64 MiB per TensorCore)
    return min(cap * 3 // 4, 112 << 20)


# --------------------------------------------------------------------------- #
# Kernels
# --------------------------------------------------------------------------- #
def _resident_kernel(x_ref, w_ref, b_ref, o_ref):
    """Full-nf contraction in one shot; weight (column block) resident in VMEM."""
    o_ref[...] = (
        jnp.dot(x_ref[...], w_ref[...], preferred_element_type=jnp.float32)
        + b_ref[...]
    ).astype(o_ref.dtype)


def _ktiled_kernel_accout(x_ref, w_ref, b_ref, o_ref):
    """K-tiled fallback, f32 output: accumulate directly into the output block."""
    k = pl.program_id(1)

    @pl.when(k == 0)
    def _():
        o_ref[...] = jnp.broadcast_to(b_ref[...], o_ref.shape).astype(o_ref.dtype)

    o_ref[...] += jnp.dot(x_ref[...], w_ref[...], preferred_element_type=jnp.float32)


def _ktiled_kernel_scratch(x_ref, w_ref, b_ref, o_ref, acc_ref):
    """K-tiled fallback, non-f32 output: f32 scratch accumulator, bias-initialized."""
    k = pl.program_id(1)

    @pl.when(k == 0)
    def _():
        acc_ref[...] = jnp.broadcast_to(b_ref[...], acc_ref.shape)

    acc_ref[...] += jnp.dot(x_ref[...], w_ref[...], preferred_element_type=jnp.float32)

    @pl.when(k == pl.num_programs(1) - 1)
    def _():
        o_ref[...] = acc_ref[...].astype(o_ref.dtype)


# --------------------------------------------------------------------------- #
# One-time parameter preparation (do at model build time, NOT per forward)
# --------------------------------------------------------------------------- #
def prepare_flatten_head_params(weight, bias, compute_dtype=None):
    """weight: [H, nf] (PyTorch nn.Linear layout), bias: [H].

    Returns (w_t [nf, H_pad] in compute dtype, b [1, H_pad] f32, H).
    """
    H, nf = weight.shape
    if compute_dtype is None:
        compute_dtype = weight.dtype
    H_pad = _round_up(H, 128)
    w_t = jnp.asarray(weight).T.astype(compute_dtype)        # [nf, H]
    b = jnp.asarray(bias).astype(jnp.float32).reshape(1, H)  # bias stays f32
    if H_pad != H:
        w_t = jnp.pad(w_t, ((0, 0), (0, H_pad - H)))
        b = jnp.pad(b, ((0, 0), (0, H_pad - H)))
    return w_t, b, H


# --------------------------------------------------------------------------- #
# Forward
# --------------------------------------------------------------------------- #
def flatten_head_forward(x, w_t, b, H, *, tm_target=512, tk_target=1024):
    """FlattenHead forward.

    x   : [B, N, F, P]
    w_t : [nf, H_pad]   prepared weight (nf = F * P, H_pad = round_up(H, 128))
    b   : [1, H_pad]    f32 bias
    H   : true output width (target_window)
    returns: [B, N, H] in x.dtype
    """
    B, N, F, P = x.shape
    nf = F * P
    nf_w, H_pad = w_t.shape
    assert nf_w == nf, f"prepared weight nf {nf_w} != F*P {nf}"
    assert H_pad % 128 == 0 and H <= H_pad
    assert b.shape == (1, H_pad)

    M = B * N
    out_dtype = x.dtype
    x_isz = jnp.dtype(x.dtype).itemsize
    w_isz = jnp.dtype(w_t.dtype).itemsize
    o_isz = jnp.dtype(out_dtype).itemsize

    # Row-major flatten of (F, P) matches torch.flatten(start_dim=-2); free reshape.
    x_flat = x.reshape(M, nf)

    # Balanced row tiles: bounded padding waste in the ragged last block, and
    # >= 2 blocks so both v7x TensorCores get work.
    n_m = max(2, pl.cdiv(M, tm_target))
    tm = max(8, _round_up(pl.cdiv(M, n_m), 8))
    grid_m = pl.cdiv(M, tm)

    budget = _vmem_budget_bytes()

    # ---- fast path: weight resident in VMEM (no K axis), optional H column split ----
    def resident_bytes(th):
        return (2 * tm * nf * x_isz        # x tiles (double-buffered)
                + nf * th * w_isz          # weight block (single-buffered)
                + 8 * th * 4               # bias block (single-buffered, f32)
                + 2 * tm * th * o_isz)     # out tiles (double-buffered)

    th = H_pad
    n_h = 1
    while resident_bytes(th) > budget and th > 128:
        n_h *= 2
        th = _round_up(pl.cdiv(H_pad, n_h), 128)
    use_resident = resident_bytes(th) <= budget

    if use_resident:
        grid_h = pl.cdiv(H_pad, th)
        need = resident_bytes(th)
        vmem_limit = int(min(budget, max(need + (8 << 20), 32 << 20)))

        def _resident_call(single_buffer):
            pm = pl.Buffered(1) if single_buffer else None
            return pl.pallas_call(
                _resident_kernel,
                out_shape=jax.ShapeDtypeStruct((M, H_pad), out_dtype),
                grid_spec=pltpu.PrefetchScalarGridSpec(
                    num_scalar_prefetch=0,
                    # H axis outermost: the (single-buffered) weight block only
                    # changes grid_h - 1 times over the whole grid.
                    grid=(grid_h, grid_m),
                    in_specs=[
                        pl.BlockSpec((tm, nf), lambda h, i: (i, 0)),            # x tile
                        pl.BlockSpec((nf, th), lambda h, i: (0, h),             # resident W
                                     pipeline_mode=pm),
                        pl.BlockSpec((1, th), lambda h, i: (0, h),              # resident b
                                     pipeline_mode=pm),
                    ],
                    out_specs=pl.BlockSpec((tm, th), lambda h, i: (i, h)),
                ),
                compiler_params=pltpu.CompilerParams(
                    dimension_semantics=("parallel", "parallel"),
                    vmem_limit_bytes=vmem_limit,
                ),
            )(x_flat, w_t, b)

        try:
            # Constant-index weight/bias blocks are fetched once; single-buffer them
            # (Buffered(1)) so the resident fast path fits v7x's 64 MiB VMEM.
            out = _resident_call(True)
        except Exception:
            # Defensive fallback to default double-buffering (same semantics).
            out = _resident_call(False)
    else:
        # ---- fallback: contraction tiled over K (huge nf * H weights) --------------
        tk = max(128, min(_round_up(tk_target, 128), _round_up(nf, 128)))
        nf_pad = _round_up(nf, tk)
        # K padding is required for correctness when tiling the contraction axis
        # (zero columns contribute exactly 0 to the dot).
        x_pad = jnp.pad(x_flat, ((0, 0), (0, nf_pad - nf))) if nf_pad != nf else x_flat
        w_pad = jnp.pad(w_t, ((0, nf_pad - nf), (0, 0))) if nf_pad != nf else w_t

        acc_in_out = out_dtype == jnp.float32
        need = (2 * tm * tk * x_isz
                + 2 * tk * H_pad * w_isz
                + 8 * H_pad * 4
                + 2 * tm * H_pad * o_isz
                + (0 if acc_in_out else tm * H_pad * 4))
        vmem_limit = int(min(budget, max(need + (8 << 20), 32 << 20)))

        kernel = _ktiled_kernel_accout if acc_in_out else _ktiled_kernel_scratch
        scratch = [] if acc_in_out else [pltpu.VMEM((tm, H_pad), jnp.float32)]
        out = pl.pallas_call(
            kernel,
            out_shape=jax.ShapeDtypeStruct((M, H_pad), out_dtype),
            grid_spec=pltpu.PrefetchScalarGridSpec(
                num_scalar_prefetch=0,
                grid=(grid_m, nf_pad // tk),
                in_specs=[
                    pl.BlockSpec((tm, tk), lambda i, k: (i, k)),       # x tile
                    pl.BlockSpec((tk, H_pad), lambda i, k: (k, 0)),    # W tile
                    pl.BlockSpec((1, H_pad), lambda i, k: (0, 0),      # bias (fetched once)
                                 pipeline_mode=pl.Buffered(1)),
                ],
                out_specs=pl.BlockSpec((tm, H_pad), lambda i, k: (i, 0)),
                scratch_shapes=scratch,
            ),
            compiler_params=pltpu.CompilerParams(
                dimension_semantics=("parallel", "arbitrary"),
                vmem_limit_bytes=vmem_limit,
            ),
        )(x_pad, w_pad, b)

    # Dropout(head_dropout) is identity in eval / p=0 — nothing to do.
    # TODO(synk): a training path would need a PRNG dropout mask.
    return out[:, :H].reshape(B, N, H)


if __name__ == "__main__":
    # Small shapes consistent with the module: B=2, N=4 vars, F=16 (d_ff), P=8 patches
    B, N, F, P = 2, 4, 16, 8
    nf = F * P                 # 128
    target_window = 32         # H

    key = jax.random.PRNGKey(0)
    kx, kw, kb = jax.random.split(key, 3)

    x = jax.random.normal(kx, (B, N, F, P), dtype=jnp.float32)

    # Deterministic init mimicking nn.Linear default: U(-1/sqrt(nf), 1/sqrt(nf))
    bound = 1.0 / sqrt(nf)
    weight = jax.random.uniform(kw, (target_window, nf), jnp.float32, -bound, bound)
    bias = jax.random.uniform(kb, (target_window,), jnp.float32, -bound, bound)

    # One-time parameter prep (transpose / cast / pad) — model-build-time cost,
    # not paid per forward call.
    w_t, b2, H = prepare_flatten_head_params(weight, bias, compute_dtype=x.dtype)

    y = flatten_head_forward(x, w_t, b2, H)
    y = jax.block_until_ready(y)

    # Reference check in plain JAX (same math).
    y_ref = x.reshape(B, N, nf) @ weight.T + bias
    assert y.shape == (B, N, target_window)
    assert jnp.allclose(y, y_ref, atol=1e-5, rtol=1e-5)

    print("KERNEL_OK")
</pallas_src>

<mosaic_0001>
module attributes {stable_mosaic.version = 11 : i64} {
  func.func @_resident_kernel(%arg0: i32, %arg1: i32, %arg2: memref<8x128xf32, #tpu.memory_space<vmem>>, %arg3: memref<128x128xf32, #tpu.memory_space<vmem>>, %arg4: memref<1x128xf32, #tpu.memory_space<vmem>>, %arg5: memref<8x128xf32, #tpu.memory_space<vmem>>) attributes {dimension_semantics = [#tpu.dimension_semantics<parallel>, #tpu.dimension_semantics<parallel>], iteration_bounds = array<i64: 1, 1>, scalar_prefetch = 0 : i64, scratch_operands = 0 : i64, tpu.core_type = #tpu.core_type<tc>, window_params = [{transform_indices = @transform_0, window_bounds = array<i64: 8, 128>}, {pipeline_mode = #tpu.pipeline_mode<synchronous>, transform_indices = @transform_1, window_bounds = array<i64: 128, 128>}, {pipeline_mode = #tpu.pipeline_mode<synchronous>, transform_indices = @transform_2, window_bounds = array<i64: 1, 128>}, {transform_indices = @transform_3, window_bounds = array<i64: 8, 128>}]} {
    %c0 = arith.constant 0 : index
    %c0_0 = arith.constant 0 : index
    %0 = vector.load %arg2[%c0, %c0_0] : memref<8x128xf32, #tpu.memory_space<vmem>>, vector<8x128xf32>
    %c0_1 = arith.constant 0 : index
    %c0_2 = arith.constant 0 : index
    %1 = vector.load %arg3[%c0_1, %c0_2] : memref<128x128xf32, #tpu.memory_space<vmem>>, vector<128x128xf32>
    %cst = arith.constant dense<0.000000e+00> : vector<8x128xf32>
    %2 = tpu.matmul %0, %1, %cst {dimension_numbers = #tpu.dot_dimension_numbers<[1], [0], [0], [1], [0, 0, 1, 1], [], []>} : vector<8x128xf32>, vector<128x128xf32>, vector<8x128xf32> -> vector<8x128xf32>
    %c0_3 = arith.constant 0 : index
    %c0_4 = arith.constant 0 : index
    %3 = vector.load %arg4[%c0_3, %c0_4] : memref<1x128xf32, #tpu.memory_space<vmem>>, vector<1x128xf32>
    %4 = vector.broadcast %3 : vector<1x128xf32> to vector<8x128xf32>
    %5 = arith.addf %2, %4 : vector<8x128xf32>
    %c0_5 = arith.constant 0 : index
    %c0_6 = arith.constant 0 : index
    %6 = vector.load %arg5[%c0_5, %c0_6] : memref<8x128xf32, #tpu.memory_space<vmem>>, vector<8x128xf32>
    tpu.vector_store %arg5[%c0_5, %c0_6], %5 {strides = array<i32>} : memref<8x128xf32, #tpu.memory_space<vmem>>, vector<8x128xf32>,
    return
  }
  func.func @transform_0(%arg0: i32, %arg1: i32) -> (i32, i32) {
    %c0_i32 = arith.constant 0 : i32
    %c0_i32_0 = arith.constant 0 : i32
    return %arg1, %c0_i32 : i32, i32
  }
  func.func @transform_1(%arg0: i32, %arg1: i32) -> (i32, i32) {
    %c0_i32 = arith.constant 0 : i32
    %c0_i32_0 = arith.constant 0 : i32
    return %c0_i32, %arg0 : i32, i32
  }
  func.func @transform_2(%arg0: i32, %arg1: i32) -> (i32, i32) {
    %c0_i32 = arith.constant 0 : i32
    %c0_i32_0 = arith.constant 0 : i32
    return %c0_i32, %arg0 : i32, i32
  }
  func.func @transform_3(%arg0: i32, %arg1: i32) -> (i32, i32) {
    %c0_i32 = arith.constant 0 : i32
    return %arg1, %arg0 : i32, i32
  }
}

module attributes {stable_mosaic.version = 11 : i64} {
  func.func @_resident_kernel(%arg0: i32, %arg1: i32, %arg2: memref<8x128xf32, #tpu.memory_space<vmem>>, %arg3: memref<128x128xf32, #tpu.memory_space<vmem>>, %arg4: memref<1x128xf32, #tpu.memory_space<vmem>>, %arg5: memref<8x128xf32, #tpu.memory_space<vmem>>) attributes {dimension_semantics = [#tpu.dimension_semantics<parallel>, #tpu.dimension_semantics<parallel>], iteration_bounds = array<i64: 1, 1>, scalar_prefetch = 0 : i64, scratch_operands = 0 : i64, tpu.core_type = #tpu.core_type<tc>, window_params = [{transform_indices = @transform_0, window_bounds = array<i64: 8, 128>}, {transform_indices = @transform_1, window_bounds = array<i64: 128, 128>}, {transform_indices = @transform_2, window_bounds = array<i64: 1, 128>}, {transform_indices = @transform_3, window_bounds = array<i64: 8, 128>}]} {
    %c0 = arith.constant 0 : index
    %c0_0 = arith.constant 0 : index
    %0 = vector.load %arg2[%c0, %c0_0] : memref<8x128xf32, #tpu.memory_space<vmem>>, vector<8x128xf32>
    %c0_1 = arith.constant 0 : index
    %c0_2 = arith.constant 0 : index
    %1 = vector.load %arg3[%c0_1, %c0_2] : memref<128x128xf32, #tpu.memory_space<vmem>>, vector<128x128xf32>
    %cst = arith.constant dense<0.000000e+00> : vector<8x128xf32>
    %2 = tpu.matmul %0, %1, %cst {dimension_numbers = #tpu.dot_dimension_numbers<[1], [0], [0], [1], [0, 0, 1, 1], [], []>} : vector<8x128xf32>, vector<128x128xf32>, vector<8x128xf32> -> vector<8x128xf32>
    %c0_3 = arith.constant 0 : index
    %c0_4 = arith.constant 0 : index
    %3 = vector.load %arg4[%c0_3, %c0_4] : memref<1x128xf32, #tpu.memory_space<vmem>>, vector<1x128xf32>
    %4 = vector.broadcast %3 : vector<1x128xf32> to vector<8x128xf32>
    %5 = arith.addf %2, %4 : vector<8x128xf32>
    %c0_5 = arith.constant 0 : index
    %c0_6 = arith.constant 0 : index
    %6 = vector.load %arg5[%c0_5, %c0_6] : memref<8x128xf32, #tpu.memory_space<vmem>>, vector<8x128xf32>
    tpu.vector_store %arg5[%c0_5, %c0_6], %5 {strides = array<i32>} : memref<8x128xf32, #tpu.memory_space<vmem>>, vector<8x128xf32>,
    return
  }
  func.func @transform_0(%arg0: i32, %arg1: i32) -> (i32, i32) {
    %c0_i32 = arith.constant 0 : i32
    %c0_i32_0 = arith.constant 0 : i32
    return %arg1, %c0_i32 : i32, i32
  }
  func.func @transform_1(%arg0: i32, %arg1: i32) -> (i32, i32) {
    %c0_i32 = arith.constant 0 : i32
    %c0_i32_0 = arith.constant 0 : i32
    return %c0_i32, %arg0 : i32, i32
  }
  func.func @transform_2(%arg0: i32, %arg1: i32) -> (i32, i32) {
    %c0_i32 = arith.constant 0 : i32
    %c0_i32_0 = arith.constant 0 : i32
    return %c0_i32, %arg0 : i32, i32
  }
  func.func @transform_3(%arg0: i32, %arg1: i32) -> (i32, i32) {
    %c0_i32 = arith.constant 0 : i32
    return %arg1, %arg0 : i32, i32
  }
}

</mosaic_0001>

<llo_original>
// kernel: tpu_custom_call.1
$region0: #{tpu_custom_call.1}
  #allocation0 [shape = 'u32[]', space=smem, size = 0x4, offset = 0x4, fixed_abs, tag = 'smem constant byte address 0x4 - core index']
  #allocation1 [shape = 'u32[144,128]{1,0:T(1,128)}', space=vmem, size = 0x12000, scoped, tag = 'internal scratch']
  %s0 = inlined_call_operand.hbm [shape: f32[8,128], index: 0, kind: input, shape index: {}]
  %s1 = inlined_call_operand.hbm [shape: f32[128,128], index: 1, kind: input, shape index: {}]
  %s2 = inlined_call_operand.vmem [shape: f32[1,128], index: 2, kind: input, shape index: {}]
  %s3 = inlined_call_operand.hbm [shape: f32[8,128], index: 3, kind: output, shape index: {}]
  %s4 = sld [smem:[#allocation0]]
  $region30: #{tpu_custom_call.1} parent=0
    _
  %s6 = ssub.s32 1, %s4
  %s7 = scalar_select 0, %s6, %s4
  $region1: #{tpu_custom_call.1} parent=0
    #allocation2 [shape = 'u8[4096]{0}', space=vmem, size = 0x1000, scoped, tag = 'input window, operand 0, single buffered']
    #allocation3 [shape = 's32[1]{0}', space=sflag, size = 0x4, scoped, tag = 'scoped memory for tpu_custom_call.1']
    #allocation4 [shape = 's32[1]{0}', space=sflag, size = 0x4, scoped, tag = 'scoped memory for tpu_custom_call.1']
    #allocation5 [shape = 'u8[65536]{0}', space=vmem, size = 0x10000, scoped, tag = 'input window, operand 1, single buffered']
    #allocation6 [shape = 's32[1]{0}', space=sflag, size = 0x4, scoped, tag = 'scoped memory for tpu_custom_call.1']
    #allocation7 [shape = 'u8[4096]{0}', space=vmem, size = 0x1000, scoped, tag = 'output window, operand 0, single buffered']
    %8 = vsyncpa [#allocation3], 0
    %9 = vsyncpa [#allocation6], 0
    %10 = vsyncpa [#allocation4], 0
    // Predicated region
    $region2: #{tpu_custom_call.1} parent=1 // pred_check
      _
    $region3: #{tpu_custom_call.1} parent=1 // pred_check_branch
      %12 = sbr.rel (0) target = $region5
    $region4: #{tpu_custom_call.1} parent=1 // pred_region
      %s14 = ssub.s32 128, 128
      %15 = vsyncadd [#allocation3], %s14
      %s17 = sshll.u32 [#allocation2], 4
      %s18 = int_to_ptr.vmem [resolvable:$true] %s17
      %20 = dma.hbm_to_vmem [thread:$0]  %s0, 128, %s18, [#allocation3]
    $region5: #{tpu_custom_call.1} parent=1 // pred_fallthru
      _
    // Predicated region
    $region6: #{tpu_custom_call.1} parent=1 // pred_check
      _
    $region7: #{tpu_custom_call.1} parent=1 // pred_check_branch
      %22 = sbr.rel (0) target = $region9
    $region8: #{tpu_custom_call.1} parent=1 // pred_region
      %s24 = ssub.s32 2048, 2048
      %25 = vsyncadd [#allocation6], %s24
      %s26 = sshll.u32 [#allocation5], 4
      %s27 = int_to_ptr.vmem [resolvable:$true] %s26
      %32 = dma.hbm_to_vmem [thread:$0]  %s1, 2048, %s27, [#allocation6], 128, 128, 8
    $region9: #{tpu_custom_call.1} parent=1 // pred_fallthru
      _
    // Predicated region
    $region10: #{tpu_custom_call.1} parent=1 // pred_check
      _
    $region11: #{tpu_custom_call.1} parent=1 // pred_check_branch
      %34 = sbr.rel (0) target = $region13
    $region12: #{tpu_custom_call.1} parent=1 // pred_region
      _
    $region13: #{tpu_custom_call.1} parent=1 // pred_fallthru
      _
    // Predicated region
    $region14: #{tpu_custom_call.1} parent=1 // pred_check
      _
    $region15: #{tpu_custom_call.1} parent=1 // pred_check_branch
      %36 = sbr.rel (0) target = $region17
    $region16: #{tpu_custom_call.1} parent=1 // pred_region
      %37 = dma.done [#allocation3], 128
    $region17: #{tpu_custom_call.1} parent=1 // pred_fallthru
      _
    // Predicated region
    $region18: #{tpu_custom_call.1} parent=1 // pred_check
      _
    $region19: #{tpu_custom_call.1} parent=1 // pred_check_branch
      %39 = sbr.rel (0) target = $region21
    $region20: #{tpu_custom_call.1} parent=1 // pred_region
      %40 = dma.done [#allocation6], 2048
    $region21: #{tpu_custom_call.1} parent=1 // pred_fallthru
      _
    %v41 = vld [vmem:[#allocation2] sm:$0xff]
    %v42 = vld [vmem:[#allocation5] sm:$0xff]
    %v43 = vld [vmem:[#allocation5 + $0x8] sm:$0xff]
    %v44 = vld [vmem:[#allocation5 + $0x10] sm:$0xff]
    %v45 = vld [vmem:[#allocation5 + $0x18] sm:$0xff]
    %v46 = vld [vmem:[#allocation5 + $0x20] sm:$0xff]
    %v47 = vld [vmem:[#allocation5 + $0x28] sm:$0xff]
    %v48 = vld [vmem:[#allocation5 + $0x30] sm:$0xff]
    %v49 = vld [vmem:[#allocation5 + $0x38] sm:$0xff]
    %v50 = vld [vmem:[#allocation5 + $0x40] sm:$0xff]
    %v51 = vld [vmem:[#allocation5 + $0x48] sm:$0xff]
    %v52 = vld [vmem:[#allocation5 + $0x50] sm:$0xff]
    %v53 = vld [vmem:[#allocation5 + $0x58] sm:$0xff]
    %v54 = vld [vmem:[#allocation5 + $0x60] sm:$0xff]
    %v55 = vld [vmem:[#allocation5 + $0x68] sm:$0xff]
    %v56 = vld [vmem:[#allocation5 + $0x70] sm:$0xff]
    %v57 = vld [vmem:[#allocation5 + $0x78] sm:$0xff]
    %v58 = vld [vmem:[%s2] sm:$0x1]
    %v60 = vlaneseq
    %v61 = vshrl.u32 %v60, 7
    %v62 = vsub.s32 0, %v61
    %v63 = vrot.slane %v58, %v62
    %65 = vmatprep.subr.mxu0 0.0
    %66 = vmatpush1.msra.mxu0 %v42
    %67 = vmatprep.subr.mxu0 0.0
    %68 = vmatpush1.msra.mxu0 %v43
    %69 = vmatprep.subr.mxu0 0.0
    %70 = vmatpush1.msra.mxu0 %v44
    %71 = vmatprep.subr.mxu0 0.0
    %72 = vmatpush1.msra.mxu0 %v45
    %73 = vmatprep.subr.mxu0 0.0
    %74 = vmatpush1.msra.mxu0 %v46
    %75 = vmatprep.subr.mxu0 0.0
    %76 = vmatpush1.msra.mxu0 %v47
    %77 = vmatprep.subr.mxu0 0.0
    %78 = vmatpush1.msra.mxu0 %v48
    %79 = vmatprep.subr.mxu0 0.0
    %80 = vmatpush1.msra.mxu0 %v49
    %81 = vmatprep.subr.mxu0 0.0
    %82 = vmatpush1.msra.mxu0 %v50
    %83 = vmatprep.subr.mxu0 0.0
    %84 = vmatpush1.msra.mxu0 %v51
    %85 = vmatprep.subr.mxu0 0.0
    %86 = vmatpush1.msra.mxu0 %v52
    %87 = vmatprep.subr.mxu0 0.0
    %88 = vmatpush1.msra.mxu0 %v53
    %89 = vmatprep.subr.mxu0 0.0
    %90 = vmatpush1.msra.mxu0 %v54
    %91 = vmatprep.subr.mxu0 0.0
    %92 = vmatpush1.msra.mxu0 %v55
    %93 = vmatprep.subr.mxu0 0.0
    %94 = vmatpush1.msra.mxu0 %v56
    %95 = vmatprep.subr.mxu0 0.0
    %96 = vmatpush1.msra.mxu0 %v57
    %97 = vmatprep.subr.mxu0 0.0
    %98 = vmatpush1.msra.mxu0 0.0
    %99 = vmatprep.subr.mxu0 0.0
    %100 = vmatpush1.msra.mxu0 0.0
    %101 = vmatprep.subr.mxu0 0.0
    %102 = vmatpush1.msra.mxu0 0.0
    %103 = vmatprep.subr.mxu0 0.0
    %104 = vmatpush1.msra.mxu0 0.0
    %105 = vmatprep.subr.mxu0 0.0
    %106 = vmatpush1.msra.mxu0 0.0
    %107 = vmatprep.subr.mxu0 0.0
    %108 = vmatpush1.msra.mxu0 0.0
    %109 = vmatprep.subr.mxu0 0.0
    %110 = vmatpush1.msra.mxu0 0.0
    %111 = vmatprep.subr.mxu0 0.0
    %112 = vmatpush1.msra.mxu0 0.0
    %113 = vmatprep.subr.mxu0 0.0
    %114 = vmatpush1.msra.mxu0 0.0
    %115 = vmatprep.subr.mxu0 0.0
    %116 = vmatpush1.msra.mxu0 0.0
    %117 = vmatprep.subr.mxu0 0.0
    %118 = vmatpush1.msra.mxu0 0.0
    %119 = vmatprep.subr.mxu0 0.0
    %120 = vmatpush1.msra.mxu0 0.0
    %121 = vmatprep.subr.mxu0 0.0
    %122 = vmatpush1.msra.mxu0 0.0
    %123 = vmatprep.subr.mxu0 0.0
    %124 = vmatpush1.msra.mxu0 0.0
    %125 = vmatprep.subr.mxu0 0.0
    %126 = vmatpush1.msra.mxu0 0.0
    %127 = vmatprep.subr.mxu0 0.0
    %128 = vmatpush1.msra.mxu0 0.0
    %129 = vmatprep.mubr.f32.mxu0 0.0
    %130 = vmatmul.mubr.f32.gmra.mrb[0].mxu0 %v41
    %v131 = vpop.f32.mrb[0].mxu0
    %v132 = vadd.f32 %v63, %v131
    %v133 = vpop.f32.mrb[0].mxu0
    %134 = vdwg.mxu0
    %135 = vst [vmem:[#allocation7] sm:$0xff] %v132
    // Predicated region
    $region22: #{tpu_custom_call.1} parent=1 // pred_check
      _
    $region23: #{tpu_custom_call.1} parent=1 // pred_check_branch
      %137 = sbr.rel (0) target = $region25
    $region24: #{tpu_custom_call.1} parent=1 // pred_region
      %s139 = ssub.s32 128, 128
      %140 = vsyncadd [#allocation4], %s139
      %s142 = sshll.u32 [#allocation7], 4
      %s143 = int_to_ptr.vmem [resolvable:$true] %s142
      %145 = dma.vmem_to_hbm [thread:$0]  %s143, 128, %s3, [#allocation4]
    $region25: #{tpu_custom_call.1} parent=1 // pred_fallthru
      _
    // Predicated region
    $region26: #{tpu_custom_call.1} parent=1 // pred_check
      _
    $region27: #{tpu_custom_call.1} parent=1 // pred_check_branch
      %147 = sbr.rel (0) target = $region29
    $region28: #{tpu_custom_call.1} parent=1 // pred_region
      %148 = dma.done [#allocation4], 128
    $region29: #{tpu_custom_call.1} parent=1 // pred_fallthru
      _
    %149 = vsyncpa [#allocation3], 1
    %150 = vsyncpa [#allocation6], 1
    %151 = vsyncpa [#allocation4], 1

// kernel: tpu_custom_call.1
$region0: #{tpu_custom_call.1}
  #allocation0 [shape = 'u32[]', space=smem, size = 0x4, offset = 0x4, fixed_abs, tag = 'smem constant byte address 0x4 - core index']
  #allocation1 [shape = 'u32[144,128]{1,0:T(1,128)}', space=vmem, size = 0x12000, scoped, tag = 'internal scratch']
  %s0 = inlined_call_operand.hbm [shape: f32[8,128], index: 0, kind: input, shape index: {}]
  %s1 = inlined_call_operand.hbm [shape: f32[128,128], index: 1, kind: input, shape index: {}]
  %s2 = inlined_call_operand.vmem [shape: f32[1,128], index: 2, kind: input, shape index: {}]
  %s3 = inlined_call_operand.hbm [shape: f32[8,128], index: 3, kind: output, shape index: {}]
  %s4 = sld [smem:[#allocation0]]
  $region30: #{tpu_custom_call.1} parent=0
    _
  %s6 = ssub.s32 1, %s4
  %s7 = scalar_select 0, %s6, %s4
  $region1: #{tpu_custom_call.1} parent=0
    #allocation2 [shape = 'u8[4096]{0}', space=vmem, size = 0x1000, scoped, tag = 'input window, operand 0, single buffered']
    #allocation3 [shape = 's32[1]{0}', space=sflag, size = 0x4, scoped, tag = 'scoped memory for tpu_custom_call.1']
    #allocation4 [shape = 's32[1]{0}', space=sflag, size = 0x4, scoped, tag = 'scoped memory for tpu_custom_call.1']
    #allocation5 [shape = 'u8[65536]{0}', space=vmem, size = 0x10000, scoped, tag = 'input window, operand 1, single buffered']
    #allocation6 [shape = 's32[1]{0}', space=sflag, size = 0x4, scoped, tag = 'scoped memory for tpu_custom_call.1']
    #allocation7 [shape = 'u8[4096]{0}', space=vmem, size = 0x1000, scoped, tag = 'output window, operand 0, single buffered']
    %8 = vsyncpa [#allocation3], 0
    %9 = vsyncpa [#allocation6], 0
    %10 = vsyncpa [#allocation4], 0
    // Predicated region
    $region2: #{tpu_custom_call.1} parent=1 // pred_check
      _
    $region3: #{tpu_custom_call.1} parent=1 // pred_check_branch
      %12 = sbr.rel (0) target = $region5
    $region4: #{tpu_custom_call.1} parent=1 // pred_region
      %s14 = ssub.s32 128, 128
      %15 = vsyncadd [#allocation3], %s14
      %s17 = sshll.u32 [#allocation2], 4
      %s18 = int_to_ptr.vmem [resolvable:$true] %s17
      %20 = dma.hbm_to_vmem [thread:$0]  %s0, 128, %s18, [#allocation3]
    $region5: #{tpu_custom_call.1} parent=1 // pred_fallthru
      _
    // Predicated region
    $region6: #{tpu_custom_call.1} parent=1 // pred_check
      _
    $region7: #{tpu_custom_call.1} parent=1 // pred_check_branch
      %22 = sbr.rel (0) target = $region9
    $region8: #{tpu_custom_call.1} parent=1 // pred_region
      %s24 = ssub.s32 2048, 2048
      %25 = vsyncadd [#allocation6], %s24
      %s26 = sshll.u32 [#allocation5], 4
      %s27 = int_to_ptr.vmem [resolvable:$true] %s26
      %32 = dma.hbm_to_vmem [thread:$0]  %s1, 2048, %s27, [#allocation6], 128, 128, 8
    $region9: #{tpu_custom_call.1} parent=1 // pred_fallthru
      _
    // Predicated region
    $region10: #{tpu_custom_call.1} parent=1 // pred_check
      _
    $region11: #{tpu_custom_call.1} parent=1 // pred_check_branch
      %34 = sbr.rel (0) target = $region13
    $region12: #{tpu_custom_call.1} parent=1 // pred_region
      _
    $region13: #{tpu_custom_call.1} parent=1 // pred_fallthru
      _
    // Predicated region
    $region14: #{tpu_custom_call.1} parent=1 // pred_check
      _
    $region15: #{tpu_custom_call.1} parent=1 // pred_check_branch
      %36 = sbr.rel (0) target = $region17
    $region16: #{tpu_custom_call.1} parent=1 // pred_region
      %37 = dma.done [#allocation3], 128
    $region17: #{tpu_custom_call.1} parent=1 // pred_fallthru
      _
    // Predicated region
    $region18: #{tpu_custom_call.1} parent=1 // pred_check
      _
    $region19: #{tpu_custom_call.1} parent=1 // pred_check_branch
      %39 = sbr.rel (0) target = $region21
    $region20: #{tpu_custom_call.1} parent=1 // pred_region
      %40 = dma.done [#allocation6], 2048
    $region21: #{tpu_custom_call.1} parent=1 // pred_fallthru
      _
    %v41 = vld [vmem:[#allocation2] sm:$0xff]
    %v42 = vld [vmem:[#allocation5] sm:$0xff]
    %v43 = vld [vmem:[#allocation5 + $0x8] sm:$0xff]
    %v44 = vld [vmem:[#allocation5 + $0x10] sm:$0xff]
    %v45 = vld [vmem:[#allocation5 + $0x18] sm:$0xff]
    %v46 = vld [vmem:[#allocation5 + $0x20] sm:$0xff]
    %v47 = vld [vmem:[#allocation5 + $0x28] sm:$0xff]
    %v48 = vld [vmem:[#allocation5 + $0x30] sm:$0xff]
    %v49 = vld [vmem:[#allocation5 + $0x38] sm:$0xff]
    %v50 = vld [vmem:[#allocation5 + $0x40] sm:$0xff]
    %v51 = vld [vmem:[#allocation5 + $0x48] sm:$0xff]
    %v52 = vld [vmem:[#allocation5 + $0x50] sm:$0xff]
    %v53 = vld [vmem:[#allocation5 + $0x58] sm:$0xff]
    %v54 = vld [vmem:[#allocation5 + $0x60] sm:$0xff]
    %v55 = vld [vmem:[#allocation5 + $0x68] sm:$0xff]
    %v56 = vld [vmem:[#allocation5 + $0x70] sm:$0xff]
    %v57 = vld [vmem:[#allocation5 + $0x78] sm:$0xff]
    %v58 = vld [vmem:[%s2] sm:$0x1]
    %v60 = vlaneseq
    %v61 = vshrl.u32 %v60, 7
    %v62 = vsub.s32 0, %v61
    %v63 = vrot.slane %v58, %v62
    %65 = vmatprep.subr.mxu0 0.0
    %66 = vmatpush1.msra.mxu0 %v42
    %67 = vmatprep.subr.mxu0 0.0
    %68 = vmatpush1.msra.mxu0 %v43
    %69 = vmatprep.subr.mxu0 0.0
    %70 = vmatpush1.msra.mxu0 %v44
    %71 = vmatprep.subr.mxu0 0.0
    %72 = vmatpush1.msra.mxu0 %v45
    %73 = vmatprep.subr.mxu0 0.0
    %74 = vmatpush1.msra.mxu0 %v46
    %75 = vmatprep.subr.mxu0 0.0
    %76 = vmatpush1.msra.mxu0 %v47
    %77 = vmatprep.subr.mxu0 0.0
    %78 = vmatpush1.msra.mxu0 %v48
    %79 = vmatprep.subr.mxu0 0.0
    %80 = vmatpush1.msra.mxu0 %v49
    %81 = vmatprep.subr.mxu0 0.0
    %82 = vmatpush1.msra.mxu0 %v50
    %83 = vmatprep.subr.mxu0 0.0
    %84 = vmatpush1.msra.mxu0 %v51
    %85 = vmatprep.subr.mxu0 0.0
    %86 = vmatpush1.msra.mxu0 %v52
    %87 = vmatprep.subr.mxu0 0.0
    %88 = vmatpush1.msra.mxu0 %v53
    %89 = vmatprep.subr.mxu0 0.0
    %90 = vmatpush1.msra.mxu0 %v54
    %91 = vmatprep.subr.mxu0 0.0
    %92 = vmatpush1.msra.mxu0 %v55
    %93 = vmatprep.subr.mxu0 0.0
    %94 = vmatpush1.msra.mxu0 %v56
    %95 = vmatprep.subr.mxu0 0.0
    %96 = vmatpush1.msra.mxu0 %v57
    %97 = vmatprep.subr.mxu0 0.0
    %98 = vmatpush1.msra.mxu0 0.0
    %99 = vmatprep.subr.mxu0 0.0
    %100 = vmatpush1.msra.mxu0 0.0
    %101 = vmatprep.subr.mxu0 0.0
    %102 = vmatpush1.msra.mxu0 0.0
    %103 = vmatprep.subr.mxu0 0.0
    %104 = vmatpush1.msra.mxu0 0.0
    %105 = vmatprep.subr.mxu0 0.0
    %106 = vmatpush1.msra.mxu0 0.0
    %107 = vmatprep.subr.mxu0 0.0
    %108 = vmatpush1.msra.mxu0 0.0
    %109 = vmatprep.subr.mxu0 0.0
    %110 = vmatpush1.msra.mxu0 0.0
    %111 = vmatprep.subr.mxu0 0.0
    %112 = vmatpush1.msra.mxu0 0.0
    %113 = vmatprep.subr.mxu0 0.0
    %114 = vmatpush1.msra.mxu0 0.0
    %115 = vmatprep.subr.mxu0 0.0
    %116 = vmatpush1.msra.mxu0 0.0
    %117 = vmatprep.subr.mxu0 0.0
    %118 = vmatpush1.msra.mxu0 0.0
    %119 = vmatprep.subr.mxu0 0.0
    %120 = vmatpush1.msra.mxu0 0.0
    %121 = vmatprep.subr.mxu0 0.0
    %122 = vmatpush1.msra.mxu0 0.0
    %123 = vmatprep.subr.mxu0 0.0
    %124 = vmatpush1.msra.mxu0 0.0
    %125 = vmatprep.subr.mxu0 0.0
    %126 = vmatpush1.msra.mxu0 0.0
    %127 = vmatprep.subr.mxu0 0.0
    %128 = vmatpush1.msra.mxu0 0.0
    %129 = vmatprep.mubr.f32.mxu0 0.0
    %130 = vmatmul.mubr.f32.gmra.mrb[0].mxu0 %v41
    %v131 = vpop.f32.mrb[0].mxu0
    %v132 = vadd.f32 %v63, %v131
    %v133 = vpop.f32.mrb[0].mxu0
    %134 = vdwg.mxu0
    %135 = vst [vmem:[#allocation7] sm:$0xff] %v132
    // Predicated region
    $region22: #{tpu_custom_call.1} parent=1 // pred_check
      _
    $region23: #{tpu_custom_call.1} parent=1 // pred_check_branch
      %137 = sbr.rel (0) target = $region25
    $region24: #{tpu_custom_call.1} parent=1 // pred_region
      %s139 = ssub.s32 128, 128
      %140 = vsyncadd [#allocation4], %s139
      %s142 = sshll.u32 [#allocation7], 4
      %s143 = int_to_ptr.vmem [resolvable:$true] %s142
      %145 = dma.vmem_to_hbm [thread:$0]  %s143, 128, %s3, [#allocation4]
    $region25: #{tpu_custom_call.1} parent=1 // pred_fallthru
      _
    // Predicated region
    $region26: #{tpu_custom_call.1} parent=1 // pred_check
      _
    $region27: #{tpu_custom_call.1} parent=1 // pred_check_branch
      %147 = sbr.rel (0) target = $region29
    $region28: #{tpu_custom_call.1} parent=1 // pred_region
      %148 = dma.done [#allocation4], 128
    $region29: #{tpu_custom_call.1} parent=1 // pred_fallthru
      _
    %149 = vsyncpa [#allocation3], 1
    %150 = vsyncpa [#allocation6], 1
    %151 = vsyncpa [#allocation4], 1

</llo_original>
